<compile_context>
chip_gen: v7x
topology: tpu7x:2x2x1
jax: 0.10.0
libtpu: 0.0.40
codegen_flags: <defaults>
</compile_context>

<pallas_src>
import functools

import jax
import jax.numpy as jnp
from jax import lax
from jax.experimental import pallas as pl
from jax.experimental.pallas import tpu as pltpu


def _conv3x3_bn_leaky_kernel(w_ref, bias_ref, x_ref, o_ref):
    """One (batch, pixel-tile) block per grid step.

    w_ref:    (Cout, 9*Cin)      bf16, BN scale already folded in
    bias_ref: (Cout, 1)          f32 folded BN bias
    x_ref:    (1, 9*Cin, TILE_P) bf16 im2col patches (pixel axis on lanes)
    o_ref:    (1, Cout, TILE_P)  output (NCHW order, pixel axis on lanes)
    """
    acc = jnp.dot(w_ref[...], x_ref[0], preferred_element_type=jnp.float32)
    y = acc + bias_ref[...]                           # folded BatchNorm bias
    y = jnp.where(y > 0, y, jnp.float32(0.01) * y)    # LeakyReLU, torch default slope
    o_ref[0] = y.astype(o_ref.dtype)


def _pick_pixel_tile(num_pixels):
    # Largest lane-aligned tile that divides the pixel count.  For real
    # YOLO-Nano resolutions (416x416 -> P=173056) this picks 1024-wide tiles;
    # blocks stay far under the scoped-VMEM defaults on v5e/v6e/v7x while the
    # lane axis stays >= 512 wide where possible.  Small / odd feature maps
    # (13x13, 26x26) fall back to a single full-extent tile.
    for t in (4096, 2048, 1024, 512, 256, 128):
        if num_pixels % t == 0:
            return t
    return num_pixels


@functools.partial(
    jax.jit, static_argnames=("stride", "eps", "tile_p", "compute_dtype"))
def conv3x3_forward(x_nchw, weight_oihw, gamma, beta, running_mean, running_var,
                    stride=1, eps=1e-5, tile_p=None, compute_dtype=jnp.bfloat16):
    """Fused Conv2d(3x3, pad=1, bias=False) + BatchNorm2d(eval) + LeakyReLU(0.01).

    x_nchw: (N, Cin, H, W) float32, weight_oihw: (Cout, Cin, 3, 3).  Returns NCHW.
    """
    N, Cin, H, W = x_nchw.shape
    Cout = weight_oihw.shape[0]
    H_out = (H + 2 - 3) // stride + 1
    W_out = (W + 2 - 3) // stride + 1
    P = H_out * W_out
    K = 9 * Cin

    # --- im2col in native NCHW (no layout transposes anywhere) -------------
    xp = jnp.pad(x_nchw, ((0, 0), (0, 0), (1, 1), (1, 1)))
    taps = []
    for dy in range(3):
        for dx in range(3):
            taps.append(
                xp[:, :,
                   dy:dy + (H_out - 1) * stride + 1:stride,
                   dx:dx + (W_out - 1) * stride + 1:stride].reshape(N, Cin, P))
    patches = jnp.concatenate(taps, axis=1).astype(compute_dtype)   # (N, 9*Cin, P)

    # --- fold BatchNorm (inference) into weights / bias, in f32 ------------
    scale = gamma / jnp.sqrt(running_var + eps)                     # (Cout,)
    bias = (beta - running_mean * scale).reshape(Cout, 1).astype(jnp.float32)
    w_mat = jnp.transpose(weight_oihw, (0, 2, 3, 1)).reshape(Cout, K)
    w_folded = (w_mat * scale[:, None]).astype(compute_dtype)       # (Cout, 9*Cin)

    if tile_p is None:
        tile_p = _pick_pixel_tile(P)
    assert P % tile_p == 0, (P, tile_p)
    grid = (N, P // tile_p)

    out = pl.pallas_call(
        _conv3x3_bn_leaky_kernel,
        out_shape=jax.ShapeDtypeStruct((N, Cout, P), x_nchw.dtype),
        grid_spec=pltpu.PrefetchScalarGridSpec(
            num_scalar_prefetch=0,
            grid=grid,
            in_specs=[
                # weights / bias: constant block index -> stay VMEM-resident
                pl.BlockSpec((Cout, K), lambda n, p: (0, 0)),
                pl.BlockSpec((Cout, 1), lambda n, p: (0, 0)),
                pl.BlockSpec((1, K, tile_p), lambda n, p: (n, 0, p)),
            ],
            out_specs=pl.BlockSpec((1, Cout, tile_p), lambda n, p: (n, 0, p)),
        ),
        compiler_params=pltpu.CompilerParams(
            dimension_semantics=("parallel", "parallel")),
    )(w_folded, bias, patches)

    # (N, Cout, H_out*W_out) is already NCHW order -> free reshape, no transpose.
    return out.reshape(N, Cout, H_out, W_out)


def _reference(x_nchw, weight_oihw, gamma, beta, running_mean, running_var,
               stride=1, eps=1e-5):
    y = lax.conv_general_dilated(
        x_nchw, weight_oihw, window_strides=(stride, stride),
        padding=((1, 1), (1, 1)),
        dimension_numbers=("NCHW", "OIHW", "NCHW"))
    scale = (gamma / jnp.sqrt(running_var + eps)).reshape(1, -1, 1, 1)
    bias = (beta - running_mean * gamma / jnp.sqrt(running_var + eps)).reshape(1, -1, 1, 1)
    y = y * scale + bias
    return jnp.where(y > 0, y, 0.01 * y)


if __name__ == "__main__":
    key = jax.random.PRNGKey(0)

    def make_case(k, N, Cin, H, W, Cout):
        ks = jax.random.split(k, 6)
        x = jax.random.normal(ks[0], (N, Cin, H, W), dtype=jnp.float32)
        w = jax.random.normal(ks[1], (Cout, Cin, 3, 3), dtype=jnp.float32) * 0.1
        gamma = jax.random.normal(ks[2], (Cout,), dtype=jnp.float32) * 0.1 + 1.0
        beta = jax.random.normal(ks[3], (Cout,), dtype=jnp.float32) * 0.1
        mean = jax.random.normal(ks[4], (Cout,), dtype=jnp.float32) * 0.1
        var = jnp.abs(jax.random.normal(ks[5], (Cout,), dtype=jnp.float32)) * 0.1 + 1.0
        return x, w, gamma, beta, mean, var

    k1, k2 = jax.random.split(key)

    # Case 1: stride=1 (small-shape stand-in for conv3x3(3, 12, 1)),
    # tile_p=128 forced so the (batch, pixel-tile) grid has multiple steps.
    x, w, g, b, m, v = make_case(k1, 2, 4, 16, 16, 8)
    out = conv3x3_forward(x, w, g, b, m, v, stride=1, tile_p=128)
    out = jax.block_until_ready(out)
    ref = _reference(x, w, g, b, m, v, stride=1)
    assert out.shape == ref.shape, (out.shape, ref.shape)
    err = float(jnp.max(jnp.abs(out - ref)))
    assert jnp.allclose(out, ref, atol=5e-2, rtol=5e-2), err  # bf16 compute vs f32 ref

    # Case 2: stride=2 (small-shape stand-in for conv3x3(12, 24, 2) in layer0).
    x, w, g, b, m, v = make_case(k2, 2, 12, 16, 16, 24)
    out2 = conv3x3_forward(x, w, g, b, m, v, stride=2)
    out2 = jax.block_until_ready(out2)
    ref2 = _reference(x, w, g, b, m, v, stride=2)
    assert out2.shape == ref2.shape, (out2.shape, ref2.shape)
    err2 = float(jnp.max(jnp.abs(out2 - ref2)))
    assert jnp.allclose(out2, ref2, atol=5e-2, rtol=5e-2), err2

    print("KERNEL_OK")
</pallas_src>

<mosaic_0001>
module attributes {stable_mosaic.version = 11 : i64} {
  func.func @_conv3x3_bn_leaky_kernel(%arg0: i32, %arg1: i32, %arg2: memref<8x36xbf16, #tpu.memory_space<vmem>>, %arg3: memref<8x1xf32, #tpu.memory_space<vmem>>, %arg4: memref<1x36x128xbf16, #tpu.memory_space<vmem>>, %arg5: memref<1x8x128xf32, #tpu.memory_space<vmem>>) attributes {dimension_semantics = [#tpu.dimension_semantics<parallel>, #tpu.dimension_semantics<parallel>], iteration_bounds = array<i64: 2, 2>, scalar_prefetch = 0 : i64, scratch_operands = 0 : i64, tpu.core_type = #tpu.core_type<tc>, window_params = [{pipeline_mode = #tpu.pipeline_mode<synchronous>, transform_indices = @transform_0, window_bounds = array<i64: 8, 36>}, {pipeline_mode = #tpu.pipeline_mode<synchronous>, transform_indices = @transform_1, window_bounds = array<i64: 8, 1>}, {transform_indices = @transform_2, window_bounds = array<i64: 1, 36, 128>}, {transform_indices = @transform_3, window_bounds = array<i64: 1, 8, 128>}]} {
    %c0 = arith.constant 0 : index
    %c0_0 = arith.constant 0 : index
    %0 = vector.load %arg2[%c0, %c0_0] : memref<8x36xbf16, #tpu.memory_space<vmem>>, vector<8x36xbf16>
    %c0_1 = arith.constant 0 : index
    %c0_2 = arith.constant 0 : index
    %c0_3 = arith.constant 0 : index
    %1 = vector.load %arg4[%c0_1, %c0_2, %c0_3] : memref<1x36x128xbf16, #tpu.memory_space<vmem>>, vector<1x36x128xbf16>
    %2 = vector.shape_cast %1 : vector<1x36x128xbf16> to vector<36x128xbf16>
    %cst = arith.constant dense<0.000000e+00> : vector<8x128xf32>
    %3 = tpu.matmul %0, %2, %cst {dimension_numbers = #tpu.dot_dimension_numbers<[1], [0], [0], [1], [0, 0, 1, 1], [], []>} : vector<8x36xbf16>, vector<36x128xbf16>, vector<8x128xf32> -> vector<8x128xf32>
    %c0_4 = arith.constant 0 : index
    %c0_5 = arith.constant 0 : index
    %4 = vector.load %arg3[%c0_4, %c0_5] : memref<8x1xf32, #tpu.memory_space<vmem>>, vector<8x1xf32>
    %5 = vector.broadcast %4 : vector<8x1xf32> to vector<8x128xf32>
    %6 = arith.addf %3, %5 : vector<8x128xf32>
    %cst_6 = arith.constant 0.000000e+00 : f32
    %7 = vector.broadcast %cst_6 : f32 to vector<8x128xf32>
    %8 = arith.cmpf ogt, %6, %7 : vector<8x128xf32>
    %cst_7 = arith.constant 0.00999999977 : f32
    %9 = vector.broadcast %cst_7 : f32 to vector<8x128xf32>
    %10 = arith.mulf %9, %6 : vector<8x128xf32>
    %11 = arith.select %8, %6, %10 : vector<8x128xi1>, vector<8x128xf32>
    %c0_8 = arith.constant 0 : index
    %c0_9 = arith.constant 0 : index
    %c0_10 = arith.constant 0 : index
    %12 = vector.load %arg5[%c0_8, %c0_9, %c0_10] : memref<1x8x128xf32, #tpu.memory_space<vmem>>, vector<1x8x128xf32>
    %13 = vector.shape_cast %12 : vector<1x8x128xf32> to vector<8x128xf32>
    %14 = vector.shape_cast %11 : vector<8x128xf32> to vector<1x8x128xf32>
    tpu.vector_store %arg5[%c0_8, %c0_9, %c0_10], %14 {strides = array<i32>} : memref<1x8x128xf32, #tpu.memory_space<vmem>>, vector<1x8x128xf32>,
    return
  }
  func.func @transform_0(%arg0: i32, %arg1: i32) -> (i32, i32) {
    %c0_i32 = arith.constant 0 : i32
    %c0_i32_0 = arith.constant 0 : i32
    %c0_i32_1 = arith.constant 0 : i32
    return %c0_i32, %c0_i32_0 : i32, i32
  }
  func.func @transform_1(%arg0: i32, %arg1: i32) -> (i32, i32) {
    %c0_i32 = arith.constant 0 : i32
    %c0_i32_0 = arith.constant 0 : i32
    %c0_i32_1 = arith.constant 0 : i32
    return %c0_i32, %c0_i32_0 : i32, i32
  }
  func.func @transform_2(%arg0: i32, %arg1: i32) -> (i32, i32, i32) {
    %c0_i32 = arith.constant 0 : i32
    %c0_i32_0 = arith.constant 0 : i32
    return %arg0, %c0_i32, %arg1 : i32, i32, i32
  }
  func.func @transform_3(%arg0: i32, %arg1: i32) -> (i32, i32, i32) {
    %c0_i32 = arith.constant 0 : i32
    %c0_i32_0 = arith.constant 0 : i32
    return %arg0, %c0_i32, %arg1 : i32, i32, i32
  }
}

</mosaic_0001>

<llo_original>
// kernel: conv3x3_forward.1
$region0: #{conv3x3_forward.1}
  #allocation0 [shape = 'u32[]', space=smem, size = 0x4, offset = 0x4, fixed_abs, tag = 'smem constant byte address 0x4 - core index']
  #allocation1 [shape = 'u32[144,128]{1,0:T(1,128)}', space=vmem, size = 0x12000, scoped, tag = 'internal scratch']
  %s0 = inlined_call_operand.vmem [shape: bf16[8,36], index: 0, kind: input, shape index: {}]
  %s1 = inlined_call_operand.vmem [shape: f32[8,1], index: 1, kind: input, shape index: {}]
  %s2 = inlined_call_operand.vmem [shape: bf16[2,36,256], index: 2, kind: input, shape index: {}]
  %s3 = inlined_call_operand.vmem [shape: f32[2,8,256], index: 3, kind: output, shape index: {}]
  %s4 = sld [smem:[#allocation0]]
  $region86: #{conv3x3_forward.1} parent=0
    _
  %s6 = ssub.s32 1, %s4
  %s7 = scalar_select 0, %s6, %s4
  $region1: #{conv3x3_forward.1} parent=0
    #allocation2 [shape = 'u8[20480]{0}', space=vmem, size = 0x5000, scoped, tag = 'input window, operand 2']
    loop: start=0, step=1, limit=6
    $region2: #{conv3x3_forward.1} parent=1 // loop_pre_header
      _
    $region3: #{conv3x3_forward.1} parent=1 // loop_header
      %s9 = sphi 0, %s13
      %p10 = scmp.ge.s32.totalorder %s9, 6
      %s16 = sphi 0, %s28
      %s17 = sphi 0, %s24
      %s18 = sphi 0, %s16
      %s19 = sphi 0, %s17
      %s20 = sphi 0, %s18
      %s21 = sphi 0, %s19
      %s29 = sphi 0, %s29
      %s31 = sphi 0, %s29
      %s32 = sphi 0, %s31
      %s46 = sphi 0, %s32
      %s50 = sphi 0, %s50
      %s52 = sphi 0, %s50
      %s53 = sphi 0, %s52
      %s67 = sphi 0, %s53
      %s75 = sphi 0, %s77
      %s78 = sphi 0, %s75
      %s79 = sphi 0, %s78
      %s95 = sphi 0, %s79
      %s103 = sphi 0, %s105
      %s106 = sphi 0, %s103
      %s107 = sphi 0, %s106
      %s123 = sphi 0, %s107
    $region4: #{conv3x3_forward.1} parent=1 // loop_header_branch
      %12 = sbr.rel (%p10) target = $region8
    $region5: #{conv3x3_forward.1} parent=1 // loop_body
      %s14 = ssub.s32 %s9, 1
      %s15 = ssub.s32 %s9, 2
      %s22 = sadd.s32 1, %s17
      %p23 = scmp.ge.s32.totalorder %s22, 2
      %s24 = scalar_select %p23, 0, %s22
      %s25 = sadd.s32 1, %s16
      %s26 = scalar_select %p23, %s25, %s16
      %p27 = scmp.ge.s32.totalorder %s26, 2
      %s28 = scalar_select %p27, 0, %s26
      %s30 = sadd.s32 %s29, 1
      %p33 = scmp.eq.s32.totalorder %s9, 3
      %p34 = scmp.ne.s32.totalorder %s29, %s31
      %p35 = scmp.eq.s32.totalorder %s9, 0
      %p36 = por %p34, %p35
      %p37 = scmp.ne.s32.totalorder %s29, %s31
      %p38 = scmp.eq.s32.totalorder %s14, 3
      %p39 = por %p37, %p38
      %p40 = scmp.ne.s32.totalorder %s31, %s32
      %p41 = scmp.eq.s32.totalorder %s14, 0
      %p42 = por %p40, %p41
      %p43 = scmp.ne.s32.totalorder %s31, %s32
      %p44 = scmp.eq.s32.totalorder %s15, 3
      %p45 = por %p43, %p44
      %p47 = scmp.ne.s32.totalorder %s32, %s46
      %p48 = scmp.eq.s32.totalorder %s15, 0
      %p49 = por %p47, %p48
      %s51 = sadd.s32 %s50, 1
      %p54 = scmp.eq.s32.totalorder %s9, 3
      %p55 = scmp.ne.s32.totalorder %s50, %s52
      %p56 = scmp.eq.s32.totalorder %s9, 0
      %p57 = por %p55, %p56
      %p58 = scmp.ne.s32.totalorder %s50, %s52
      %p59 = scmp.eq.s32.totalorder %s14, 3
      %p60 = por %p58, %p59
      %p61 = scmp.ne.s32.totalorder %s52, %s53
      %p62 = scmp.eq.s32.totalorder %s14, 0
      %p63 = por %p61, %p62
      %p64 = scmp.ne.s32.totalorder %s52, %s53
      %p65 = scmp.eq.s32.totalorder %s15, 3
      %p66 = por %p64, %p65
      %p68 = scmp.ne.s32.totalorder %s53, %s67
      %p69 = scmp.eq.s32.totalorder %s15, 0
      %p70 = por %p68, %p69
      %s71 = ssub.s32 %s16, %s28
      %s72 = ssub.s32 %s17, %s24
      %s73 = sor.u32 %s71, %s72
      %p74 = scmp.eq.s32.totalorder %s73, 0
      %s76 = sadd.s32 %s75, 1
      %s77 = scalar_select %p74, %s75, %s76
      %p80 = pneg %p74
      %p81 = scmp.eq.s32.totalorder %s9, 3
      %p82 = por %p80, %p81
      %p83 = scmp.ne.s32.totalorder %s75, %s78
      %p84 = scmp.eq.s32.totalorder %s9, 0
      %p85 = por %p83, %p84
      %p86 = scmp.ne.s32.totalorder %s75, %s78
      %p87 = scmp.eq.s32.totalorder %s14, 3
      %p88 = por %p86, %p87
      %p89 = scmp.ne.s32.totalorder %s78, %s79
      %p90 = scmp.eq.s32.totalorder %s14, 0
      %p91 = por %p89, %p90
      %p92 = scmp.ne.s32.totalorder %s78, %s79
      %p93 = scmp.eq.s32.totalorder %s15, 3
      %p94 = por %p92, %p93
      %p96 = scmp.ne.s32.totalorder %s79, %s95
      %p97 = scmp.eq.s32.totalorder %s15, 0
      %p98 = por %p96, %p97
      %s99 = ssub.s32 %s16, %s28
      %s100 = ssub.s32 %s17, %s24
      %s101 = sor.u32 %s99, %s100
      %p102 = scmp.eq.s32.totalorder %s101, 0
      %s104 = sadd.s32 %s103, 1
      %s105 = scalar_select %p102, %s103, %s104
      %p108 = pneg %p102
      %p109 = scmp.eq.s32.totalorder %s9, 3
      %p110 = por %p108, %p109
      %p111 = scmp.ne.s32.totalorder %s103, %s106
      %p112 = scmp.eq.s32.totalorder %s9, 0
      %p113 = por %p111, %p112
      %p114 = scmp.ne.s32.totalorder %s103, %s106
      %p115 = scmp.eq.s32.totalorder %s14, 3
      %p116 = por %p114, %p115
      %p117 = scmp.ne.s32.totalorder %s106, %s107
      %p118 = scmp.eq.s32.totalorder %s14, 0
      %p119 = por %p117, %p118
      %p120 = scmp.ne.s32.totalorder %s106, %s107
      %p121 = scmp.eq.s32.totalorder %s15, 3
      %p122 = por %p120, %p121
      %p124 = scmp.ne.s32.totalorder %s107, %s123
      %p125 = scmp.eq.s32.totalorder %s15, 0
      %p126 = por %p124, %p125
      %p127 = scmp.le.s32.totalorder 1, %s9
      %p128 = scmp.lt.s32.totalorder %s9, 5
      %p129 = pnand %p127, %p128
      %p130 = pneg %p129
      // Predicated region
      $region9: #{conv3x3_forward.1} parent=5 // pred_check
        _
      $region10: #{conv3x3_forward.1} parent=5 // pred_check_branch
        %132 = sbr.rel (%p129) target = $region12
      $region11: #{conv3x3_forward.1} parent=5 // pred_region
        %s133 = ssub.s32 %s9, 1
        // Predicated region
        $region13: #{conv3x3_forward.1} parent=11 // pred_check
          %p134 = pneg %p42
        $region14: #{conv3x3_forward.1} parent=11 // pred_check_branch
          %136 = sbr.rel (%p134) target = $region16
        $region15: #{conv3x3_forward.1} parent=11 // pred_region
          _
        $region16: #{conv3x3_forward.1} parent=11 // pred_fallthru
          _
        // Predicated region
        $region17: #{conv3x3_forward.1} parent=11 // pred_check
          %p137 = pneg %p63
        $region18: #{conv3x3_forward.1} parent=11 // pred_check_branch
          %139 = sbr.rel (%p137) target = $region20
        $region19: #{conv3x3_forward.1} parent=11 // pred_region
          _
        $region20: #{conv3x3_forward.1} parent=11 // pred_fallthru
          _
      $region12: #{conv3x3_forward.1} parent=5 // pred_fallthru
        _
      %p140 = scmp.lt.s32.totalorder %s9, 4
      // Predicated region
      $region21: #{conv3x3_forward.1} parent=5 // pred_check
        %p141 = pneg %p140
      $region22: #{conv3x3_forward.1} parent=5 // pred_check_branch
        %143 = sbr.rel (%p141) target = $region24
      $region23: #{conv3x3_forward.1} parent=5 // pred_region
        // Predicated region
        $region25: #{conv3x3_forward.1} parent=23 // pred_check
          %p144 = pneg %p85
        $region26: #{conv3x3_forward.1} parent=23 // pred_check_branch
          %146 = sbr.rel (%p144) target = $region28
        $region27: #{conv3x3_forward.1} parent=23 // pred_region
          %s147 = sand.u32 %s75, 1
          %s148 = sand.u32 %s75, 1
          %s149 = smul.addr %s148, 20
          %s150 = scalar_lea.vmem [#allocation2], %s149
          %s151 = smul.addr %s16, 10
          %s152 = sadd.s32 %s17, %s151
          %s153 = smul.addr %s152, 4
          %s154 = scalar_lea.vmem %s2, %s153
          // Predicated region
          $region29: #{conv3x3_forward.1} parent=27 // pred_check
            _
          $region30: #{conv3x3_forward.1} parent=27 // pred_check_branch
            %156 = sbr.rel (0) target = $region32
          $region31: #{conv3x3_forward.1} parent=27 // pred_region
            // Predicated region
            $region33: #{conv3x3_forward.1} parent=31 // pred_check
              _
            $region34: #{conv3x3_forward.1} parent=31 // pred_check_branch
              %158 = sbr.rel target = $region36
            $region35: #{conv3x3_forward.1} parent=31 // pred_region
              // Predicated region
              $region48: #{conv3x3_forward.1} parent=35 // pred_check
                _
              $region49: #{conv3x3_forward.1} parent=35 // pred_check_branch
                %181 = sbr.rel (0) target = $region51
              $region50: #{conv3x3_forward.1} parent=35 // pred_region
                loop: start=0, step=1, limit=1
                $region52: #{conv3x3_forward.1} parent=50 // loop_pre_header
                  _
                $region53: #{conv3x3_forward.1} parent=50 // loop_header
                  %s183 = sphi 0, %s187
                  %p184 = scmp.ge.s32.totalorder %s183, 1
                  %s188 = sphi %s154, %s154
                  %s189 = sphi %s150, %s150
                $region54: #{conv3x3_forward.1} parent=50 // loop_header_branch
                  %186 = sbr.rel (%p184) target = $region58
                $region55: #{conv3x3_forward.1} parent=50 // loop_body
                  _
                $region56: #{conv3x3_forward.1} parent=50 // loop_footer
                  %s187 = sadd.s32 1, %s183
                $region57: #{conv3x3_forward.1} parent=50 // loop_footer_branch
                  %182 = sbr.rel target = $region53
                $region58: #{conv3x3_forward.1} parent=50 // loop_exit
                  _
                loop: start=0, step=1, limit=1
                $region59: #{conv3x3_forward.1} parent=50 // loop_pre_header
                  _
                $region60: #{conv3x3_forward.1} parent=50 // loop_header
                  %s192 = sphi 0, %s196
                  %p193 = scmp.ge.s32.totalorder %s192, 1
                  %s197 = sphi %s154, %s154
                  %s198 = sphi %s150, %s150
                $region61: #{conv3x3_forward.1} parent=50 // loop_header_branch
                  %195 = sbr.rel (%p193) target = $region65
                $region62: #{conv3x3_forward.1} parent=50 // loop_body
                  %v199 = vld [vmem:[%s197] sm:$0xf]
                  %200 = vst [vmem:[%s198] sm:$0xf] %v199
                  %v201 = vld [vmem:[%s197 + $0x8] sm:$0xf]
                  %202 = vst [vmem:[%s198 + $0x4] sm:$0xf] %v201
                  %v203 = vld [vmem:[%s197 + $0x10] sm:$0xf]
                  %204 = vst [vmem:[%s198 + $0x8] sm:$0xf] %v203
                  %v205 = vld [vmem:[%s197 + $0x18] sm:$0xf]
                  %206 = vst [vmem:[%s198 + $0xc] sm:$0xf] %v205
                  %v207 = vld [vmem:[%s197 + $0x20] sm:$0xf]
                  %208 = vst [vmem:[%s198 + $0x10] sm:$0xf] %v207
                $region63: #{conv3x3_forward.1} parent=50 // loop_footer
                  %s196 = sadd.s32 1, %s192
                $region64: #{conv3x3_forward.1} parent=50 // loop_footer_branch
                  %191 = sbr.rel target = $region60
                $region65: #{conv3x3_forward.1} parent=50 // loop_exit
                  _
              $region51: #{conv3x3_forward.1} parent=35 // pred_fallthru
                _
            $region36: #{conv3x3_forward.1} parent=31 // pred_fallthru
              _
            // Predicated region
            $region37: #{conv3x3_forward.1} parent=31 // pred_check
              _
            $region38: #{conv3x3_forward.1} parent=31 // pred_check_branch
              %160 = sbr.rel (0) target = $region40
            $region39: #{conv3x3_forward.1} parent=31 // pred_region
              loop: start=0, step=1, limit=1
              $region41: #{conv3x3_forward.1} parent=39 // loop_pre_header
                _
              $region42: #{conv3x3_forward.1} parent=39 // loop_header
                %s163 = sphi 0, %s167
                %p164 = scmp.ge.s32.totalorder %s163, 1
                %s168 = sphi %s154, %s154
                %s169 = sphi %s150, %s150
              $region43: #{conv3x3_forward.1} parent=39 // loop_header_branch
                %166 = sbr.rel (%p164) target = $region47
              $region44: #{conv3x3_forward.1} parent=39 // loop_body
                %v170 = vld [vmem:[%s168] sm:$0xf]
                %171 = vst [vmem:[%s169] sm:$0xf] %v170
                %v172 = vld [vmem:[%s168 + $0x8] sm:$0xf]
                %173 = vst [vmem:[%s169 + $0x4] sm:$0xf] %v172
                %v174 = vld [vmem:[%s168 + $0x10] sm:$0xf]
                %175 = vst [vmem:[%s169 + $0x8] sm:$0xf] %v174
                %v176 = vld [vmem:[%s168 + $0x18] sm:$0xf]
                %177 = vst [vmem:[%s169 + $0xc] sm:$0xf] %v176
                %v178 = vld [vmem:[%s168 + $0x20] sm:$0xf]
                %179 = vst [vmem:[%s169 + $0x10] sm:$0xf] %v178
              $region45: #{conv3x3_forward.1} parent=39 // loop_footer
                %s167 = sadd.s32 1, %s163
              $region46: #{conv3x3_forward.1} parent=39 // loop_footer_branch
                %162 = sbr.rel target = $region42
              $region47: #{conv3x3_forward.1} parent=39 // loop_exit
                _
            $region40: #{conv3x3_forward.1} parent=31 // pred_fallthru
              _
          $region32: #{conv3x3_forward.1} parent=27 // pred_fallthru
            _
          %209 = vnop
        $region28: #{conv3x3_forward.1} parent=23 // pred_fallthru
          _
      $region24: #{conv3x3_forward.1} parent=5 // pred_fallthru
        _
      %p210 = scmp.le.s32.totalorder 1, %s9
      %p211 = scmp.lt.s32.totalorder %s9, 5
      %p212 = pnand %p210, %p211
      %p213 = pneg %p212
      // Predicated region
      $region66: #{conv3x3_forward.1} parent=5 // pred_check
        _
      $region67: #{conv3x3_forward.1} parent=5 // pred_check_branch
        %215 = sbr.rel (%p212) target = $region69
      $region68: #{conv3x3_forward.1} parent=5 // pred_region
        %s216 = ssub.s32 %s9, 1
        %s217 = sand.u32 %s78, 1
        %s218 = sand.u32 %s78, 1
        %s219 = smul.addr %s218, 20
        %s220 = scalar_lea.vmem [#allocation2], %s219
        // Predicated region
        $region70: #{conv3x3_forward.1} parent=68 // pred_check
          %p221 = pneg %p91
        $region71: #{conv3x3_forward.1} parent=68 // pred_check_branch
          %223 = sbr.rel (%p221) target = $region73
        $region72: #{conv3x3_forward.1} parent=68 // pred_region
          _
        $region73: #{conv3x3_forward.1} parent=68 // pred_fallthru
          _
        %p224 = pneg %p42
        %p225 = pneg %p39
        %p226 = pneg %p63
        %p227 = pneg %p60
        %s228 = sand.u32 %s78, 1
        %s229 = sand.u32 %s78, 1
        %s230 = smul.addr %s229, 20
        %s231 = scalar_lea.vmem [#allocation2], %s230
        %p232 = pneg %p91
        %p233 = pneg %p88
        %p234 = pneg %p119
        %p235 = pneg %p116
        %p236 = scmp.lt.s32.totalorder %s18, 1
        %s237 = scalar_select %p236, %s18, 1
        %p238 = scmp.lt.s32.totalorder %s19, 1
        %s239 = scalar_select %p238, %s19, 1
        %s240 = smul.addr %s237, 2
        %s241 = sadd.s32 %s239, %s240
        %s242 = smul.addr %s241, 8
        %s243 = scalar_lea.vmem %s3, %s242
        %p244 = scmp.lt.s32.totalorder %s18, 1
        %s245 = scalar_select %p244, %s18, 1
        %p246 = scmp.lt.s32.totalorder %s19, 1
        %s247 = scalar_select %p246, %s19, 1
        %s248 = smul.addr %s245, 2
        %s249 = sadd.s32 %s247, %s248
        %s250 = smul.addr %s249, 8
        %s251 = scalar_lea.vmem %s3, %s250
        %v253 = vld [vmem:[%s0] sm:$0xf]
        %v254 = vld [vmem:[%s220] sm:$0xf]
        %v255 = vld [vmem:[%s220 + $0x4] sm:$0xf]
        %v256 = vld [vmem:[%s220 + $0x8] sm:$0xf]
        %v257 = vld [vmem:[%s220 + $0xc] sm:$0xf]
        %v258 = vld [vmem:[%s220 + $0x10] sm:$0x3]
        %v259 = vld [vmem:[%s1] sm:$0xff]
        %261 = vset.pattern.permute.xlu0 0
        %262 = vperm.xlu0 %261, %v259
        %v263 = vpop.permute.xlu0 %262
        %v270 = vunpack.c.l.b16 %v254
        %v271 = vunpack.c.l.b16 %v255
        %v272 = vunpack.c.l.b16 %v256
        %v273 = vunpack.c.l.b16 %v257
        %v274 = vunpack.c.l.b16 %v258
        %v275 = vpack.c.b16 %v271, %v270
        %v276 = vpack.c.b16 %v273, %v272
        %v277 = vpack.c.b16 %v274, %v274
        %vm280 = vcmask 293888
        %v282 = vsel %vm280, %v253, 0
        %vm284 = vcmask 1041408
        %v286 = vsel %vm284, %v277, 0
        %288 = vmatprep.subr.bf16.mxu0 0
        %289 = vmatpush1.bf16.msra.mxu0 %v275
        %290 = vmatprep.subr.bf16.mxu0 0
        %291 = vmatpush1.bf16.msra.mxu0 %v276
        %292 = vmatprep.subr.bf16.mxu0 0
        %293 = vmatpush1.bf16.msra.mxu0 %v286
        %294 = vmatprep.subr.bf16.mxu0 0
        %295 = vmatpush1.bf16.msra.mxu0 0
        %296 = vmatprep.subr.bf16.mxu0 0
        %297 = vmatpush1.bf16.msra.mxu0 0
        %298 = vmatprep.subr.bf16.mxu0 0
        %299 = vmatpush1.bf16.msra.mxu0 0
        %300 = vmatprep.subr.bf16.mxu0 0
        %301 = vmatpush1.bf16.msra.mxu0 0
        %302 = vmatprep.subr.bf16.mxu0 0
        %303 = vmatpush1.bf16.msra.mxu0 0
        %304 = vmatprep.subr.bf16.mxu0 0
        %305 = vmatpush1.bf16.msra.mxu0 0
        %306 = vmatprep.subr.bf16.mxu0 0
        %307 = vmatpush1.bf16.msra.mxu0 0
        %308 = vmatprep.subr.bf16.mxu0 0
        %309 = vmatpush1.bf16.msra.mxu0 0
        %310 = vmatprep.subr.bf16.mxu0 0
        %311 = vmatpush1.bf16.msra.mxu0 0
        %312 = vmatprep.subr.bf16.mxu0 0
        %313 = vmatpush1.bf16.msra.mxu0 0
        %314 = vmatprep.subr.bf16.mxu0 0
        %315 = vmatpush1.bf16.msra.mxu0 0
        %316 = vmatprep.subr.bf16.mxu0 0
        %317 = vmatpush1.bf16.msra.mxu0 0
        %318 = vmatprep.subr.bf16.mxu0 0
        %319 = vmatpush1.bf16.msra.mxu0 0
        %320 = vmatprep.mubr.bf16.mxu0 0
        %321 = vmatmul.mubr.bf16.gmra.mrb[0].mxu0 %v282
        %v322 = vpop.f32.mrb[0].mxu0
        %v323 = vadd.f32 %v263, %v322
        %v324 = vpop.f32.mrb[0].mxu0
        %v325 = vpop.f32.mrb[0].mxu0
        %v326 = vpop.f32.mrb[0].mxu0
        %327 = vdwg.mxu0
        %vm328 = vcmp.gt.f32.partialorder %v323, 0.0
        %v329 = vmul.f32 %v323, 0.01
        %v330 = vsel %vm328, %v323, %v329
        %331 = vst [vmem:[%s251] sm:$0xff] %v330
        %p332 = scmp.lt.s32.totalorder %s18, 1
        %s333 = scalar_select %p332, %s18, 1
        %p334 = scmp.lt.s32.totalorder %s19, 1
        %s335 = scalar_select %p334, %s19, 1
        %s336 = smul.addr %s333, 2
        %s337 = sadd.s32 %s335, %s336
        %s338 = smul.addr %s337, 8
        %s339 = scalar_lea.vmem %s3, %s338
        // Predicated region
        $region74: #{conv3x3_forward.1} parent=68 // pred_check
          %p340 = pneg %p116
        $region75: #{conv3x3_forward.1} parent=68 // pred_check_branch
          %342 = sbr.rel (%p340) target = $region77
        $region76: #{conv3x3_forward.1} parent=68 // pred_region
          _
        $region77: #{conv3x3_forward.1} parent=68 // pred_fallthru
          _
      $region69: #{conv3x3_forward.1} parent=5 // pred_fallthru
        _
      %p343 = scmp.le.s32.totalorder 2, %s9
      // Predicated region
      $region78: #{conv3x3_forward.1} parent=5 // pred_check
        %p344 = pneg %p343
      $region79: #{conv3x3_forward.1} parent=5 // pred_check_branch
        %346 = sbr.rel (%p344) target = $region81
      $region80: #{conv3x3_forward.1} parent=5 // pred_region
        %s347 = ssub.s32 %s9, 2
        // Predicated region
        $region82: #{conv3x3_forward.1} parent=80 // pred_check
          %p348 = pneg %p122
        $region83: #{conv3x3_forward.1} parent=80 // pred_check_branch
          %350 = sbr.rel (%p348) target = $region85
        $region84: #{conv3x3_forward.1} parent=80 // pred_region
          %p351 = scmp.lt.s32.totalorder %s20, 1
          %s352 = scalar_select %p351, %s20, 1
          %p353 = scmp.lt.s32.totalorder %s21, 1
          %s354 = scalar_select %p353, %s21, 1
          %s355 = smul.addr %s352, 2
          %s356 = sadd.s32 %s354, %s355
          %s357 = smul.addr %s356, 8
          %s358 = scalar_lea.vmem %s3, %s357
        $region85: #{conv3x3_forward.1} parent=80 // pred_fallthru
          _
      $region81: #{conv3x3_forward.1} parent=5 // pred_fallthru
        _
    $region6: #{conv3x3_forward.1} parent=1 // loop_footer
      %s13 = sadd.s32 1, %s9
    $region7: #{conv3x3_forward.1} parent=1 // loop_footer_branch
      %8 = sbr.rel target = $region3
    $region8: #{conv3x3_forward.1} parent=1 // loop_exit
      _

</llo_original>
